<compile_context>
chip_gen: v7x
topology: tpu7x:2x2x1
jax: 0.10.0
libtpu: 0.0.40
codegen_flags: <defaults>
</compile_context>

<pallas_src>
import functools

import jax
import jax.numpy as jnp
from jax import lax
from jax.experimental import pallas as pl
from jax.experimental.pallas import tpu as pltpu


def _round_up(x, n):
    return (x + n - 1) // n * n


def _vmem_limit_bytes():
    """Generation-aware scoped-VMEM limit: ~3/4 of physical, capped at 96 MiB."""
    try:
        cap = int(pltpu.get_tpu_info().vmem_capacity_bytes)
    except Exception:
        cap = 64 * 1024 * 1024  # conservative (v7x-sized) fallback
    return min(cap * 3 // 4, 96 * 1024 * 1024)


def _num_tensorcores():
    """Best-effort TensorCore-per-chip count (v7x has 2; v5e/v6e have 1)."""
    try:
        kind = jax.devices()[0].device_kind.lower()
        if "v7" in kind or "7x" in kind:
            return 2
    except Exception:
        pass
    return 1


def _vmem_bytes_estimate(b_tile, c_tile, d_pad):
    """Conservative per-kernel VMEM estimate: double-buffered blocks + resident
    accumulators + (Bt, Ct) f32 intermediates."""
    lane = 128
    x_blk = 2 * b_tile * d_pad * 2          # bf16 activations, double buffered
    w_blk = 2 * d_pad * c_tile * 2          # bf16 weights, double buffered
    lbl_blk = 2 * b_tile * lane * 4         # (Bt,1) int32, lane-padded
    out_blk = 2 * b_tile * lane * 4         # (Bt,1) f32 output
    scratch = 3 * b_tile * lane * 4         # m / l / t accumulators
    temps = 4 * b_tile * c_tile * 4         # cosine / logits / exp f32 temps
    return x_blk + w_blk + lbl_blk + out_blk + scratch + temps


def cosface_loss_kernel(x_ref, w_ref, lbl_ref, loss_ref,
                        m_ref, l_ref, t_ref,
                        *, s, m, c_tile, num_classes, c_padded):
    """One (batch_tile, class_tile) grid step of CosFace + cross-entropy.

    x_ref:   (Bt, D)  bf16, already L2-normalized
    w_ref:   (D, Ct)  bf16, already L2-normalized (and transposed)
    lbl_ref: (Bt, 1)  int32
    loss_ref:(Bt, 1)  f32 per-example cross-entropy (written on last class tile)
    m/l/t:   (Bt, 1)  f32 running row-max / sum-exp / target-logit accumulators
    """
    c = pl.program_id(1)
    neg_big = jnp.float32(-1e30)

    # ---- init per-batch-tile accumulators (first class tile) ----
    @pl.when(c == 0)
    def _init():
        m_ref[...] = jnp.full(m_ref.shape, -1e30, jnp.float32)
        l_ref[...] = jnp.zeros(l_ref.shape, jnp.float32)
        t_ref[...] = jnp.zeros(t_ref.shape, jnp.float32)

    # ---- cosine = x_n @ w_n^T as a plain (M,K)x(K,N) MXU matmul ----
    cosine = jnp.dot(x_ref[...], w_ref[...],
                     preferred_element_type=jnp.float32)      # (Bt, Ct) f32

    bt, ct = cosine.shape
    # Local (in-tile) class ids: the tile offset is folded into the scalar
    # operands so no (Bt, Ct) int32 add is materialized on the VPU.
    local_iota = lax.broadcasted_iota(jnp.int32, (bt, ct), 1)
    local_label = lbl_ref[...] - c * c_tile                    # (Bt, 1)
    is_target = local_iota == local_label                      # (Bt, Ct) bool

    # CosFace margin + scale, no materialized one-hot.
    logits = s * jnp.where(is_target, cosine - m, cosine)
    if c_padded:
        # Only emitted when fake (padded) classes exist; for all but the last
        # class tile the threshold is >= c_tile so the select is a no-op.
        logits = jnp.where(local_iota < (num_classes - c * c_tile),
                           logits, neg_big)

    # Target logit (each row's label lives in exactly one class tile).
    t_ref[...] += jnp.sum(jnp.where(is_target, logits, 0.0),
                          axis=-1, keepdims=True)

    # ---- online log-sum-exp update ----
    m_prev = m_ref[...]
    m_new = jnp.maximum(m_prev, jnp.max(logits, axis=-1, keepdims=True))
    l_ref[...] = (l_ref[...] * jnp.exp(m_prev - m_new)
                  + jnp.sum(jnp.exp(logits - m_new), axis=-1, keepdims=True))
    m_ref[...] = m_new

    # ---- finalize: per-example cross-entropy = LSE - target_logit ----
    @pl.when(c == pl.num_programs(1) - 1)
    def _finalize():
        loss_ref[...] = m_ref[...] + jnp.log(l_ref[...]) - t_ref[...]


def cosface_loss(x, weight, label, *, s=30.0, m=0.35):
    """x: (B, D) float, weight: (C, D) float, label: (B,) int -> scalar f32 loss."""
    B, D = x.shape
    C, Dw = weight.shape
    assert D == Dw

    num_tc = _num_tensorcores()
    vmem_limit = _vmem_limit_bytes()

    # ---- tile selection (generation-aware) ----
    d_pad = _round_up(D, 128)
    c_tile = min(1024, _round_up(C, 128))
    b_align = 256 if B >= 256 else 8              # 256-aligned M for v6e/v7x MXU
    # Shrink the class tile first if even the minimal batch tile would not fit.
    while c_tile > 128 and _vmem_bytes_estimate(b_align, c_tile, d_pad) > vmem_limit:
        c_tile = max(128, c_tile // 2)
    # Grow the batch tile as far as VMEM allows: every doubling halves the
    # number of passes over the (dominant) weight stream.
    b_cap = _round_up(B, b_align)
    b_tile = min(b_cap, b_align)
    while b_tile < b_cap:
        cand = min(_round_up(b_tile * 2, b_align), b_cap)
        if _vmem_bytes_estimate(cand, c_tile, d_pad) > vmem_limit:
            break
        b_tile = cand
    b_pad = _round_up(B, b_tile)
    nb = b_pad // b_tile
    # On 2-TensorCore parts, prefer nb == 2 over nb == 1 so the "parallel"
    # batch axis actually shards across cores.
    if num_tc >= 2 and nb == 1 and b_tile >= 2 * b_align:
        b_tile = _round_up(b_tile // 2, b_align)
        b_pad = _round_up(B, b_tile)
        nb = b_pad // b_tile

    c_pad = _round_up(C, c_tile)
    nc = c_pad // c_tile
    # Online-LSE init assumes every class tile holds >= 1 real class.
    assert c_pad - C < c_tile

    # ---- preprocessing (plain JAX, once per call) ----
    # L2-normalize in f32 (matches F.normalize eps=1e-12), cast to bf16 for the
    # MXU, pad to tile-aligned shapes.  Weights are transposed to (D, C) so the
    # kernel matmul is a plain (M,K)x(K,N) with no in-kernel transpose.
    eps = 1e-12
    x_n = x.astype(jnp.float32)
    x_n = x_n / jnp.maximum(jnp.linalg.norm(x_n, axis=1, keepdims=True), eps)
    w_n = weight.astype(jnp.float32)
    w_n = w_n / jnp.maximum(jnp.linalg.norm(w_n, axis=1, keepdims=True), eps)

    x_p = jnp.pad(x_n, ((0, b_pad - B), (0, d_pad - D))).astype(jnp.bfloat16)
    w_p = jnp.pad(w_n, ((0, c_pad - C), (0, d_pad - D))).T.astype(jnp.bfloat16)
    lbl_p = jnp.pad(label.astype(jnp.int32), (0, b_pad - B),
                    constant_values=-1).reshape(b_pad, 1)

    kernel = functools.partial(
        cosface_loss_kernel,
        s=float(s), m=float(m),
        c_tile=int(c_tile), num_classes=int(C), c_padded=bool(c_pad > C))

    per_example = pl.pallas_call(
        kernel,
        out_shape=jax.ShapeDtypeStruct((b_pad, 1), jnp.float32),
        grid_spec=pltpu.PrefetchScalarGridSpec(
            num_scalar_prefetch=0,
            grid=(nb, nc),
            in_specs=[
                pl.BlockSpec((b_tile, d_pad), lambda b, c: (b, 0)),   # x_n  (bf16)
                # Weight stream: add pipeline_mode=pl.Buffered(3) here only if a
                # profile shows DMA-wait bubbles between class tiles.
                pl.BlockSpec((d_pad, c_tile), lambda b, c: (0, c)),   # w_n^T (bf16)
                pl.BlockSpec((b_tile, 1), lambda b, c: (b, 0)),       # labels
            ],
            out_specs=pl.BlockSpec((b_tile, 1), lambda b, c: (b, 0)),
            scratch_shapes=[
                pltpu.VMEM((b_tile, 1), jnp.float32),   # running row max
                pltpu.VMEM((b_tile, 1), jnp.float32),   # running sum-exp
                pltpu.VMEM((b_tile, 1), jnp.float32),   # target logit
            ],
        ),
        compiler_params=pltpu.CompilerParams(
            dimension_semantics=("parallel", "arbitrary"),
            vmem_limit_bytes=int(vmem_limit),
        ),
        cost_estimate=pl.CostEstimate(
            flops=2 * b_pad * c_pad * d_pad,
            transcendentals=b_pad * c_pad,
            bytes_accessed=(b_pad * d_pad * 2            # bf16 activation stream
                            + nb * c_pad * d_pad * 2     # bf16 weight stream x nb
                            + b_pad * 4 * 2),            # labels + per-example loss
        ),
    )(x_p, w_p, lbl_p)

    # Tiny final reduction (mean over the real batch rows) stays in plain JAX so
    # the batch grid axis can remain "parallel" across TensorCores.
    return jnp.mean(per_example[:B, 0])


def reference_cosface_loss(x, weight, label, *, s=30.0, m=0.35):
    """Pure-JAX f32 reference mirroring the PyTorch module."""
    eps = 1e-12
    x_n = x / jnp.maximum(jnp.linalg.norm(x, axis=1, keepdims=True), eps)
    w_n = weight / jnp.maximum(jnp.linalg.norm(weight, axis=1, keepdims=True), eps)
    cosine = x_n @ w_n.T
    one_hot = jax.nn.one_hot(label, cosine.shape[1], dtype=cosine.dtype)
    logits = s * (cosine - m * one_hot)
    logp = jax.nn.log_softmax(logits, axis=-1)
    return -jnp.mean(jnp.sum(one_hot * logp, axis=-1))


if __name__ == "__main__":
    # Small, deterministic example shapes (padded to TPU tiles inside the wrapper).
    batch = 8
    in_features = 32
    out_features = 16

    key = jax.random.PRNGKey(0)
    k_x, k_w, k_lbl = jax.random.split(key, 3)

    x = jax.random.normal(k_x, (batch, in_features), dtype=jnp.float32)

    # Xavier-uniform init for weight (out_features, in_features), as in __init__.
    bound = (6.0 / (in_features + out_features)) ** 0.5
    weight = jax.random.uniform(
        k_w, (out_features, in_features), dtype=jnp.float32,
        minval=-bound, maxval=bound)

    label = jax.random.randint(k_lbl, (batch,), 0, out_features, dtype=jnp.int32)

    loss = cosface_loss(x, weight, label, s=30.0, m=0.35)
    loss = jax.block_until_ready(loss)

    ref = reference_cosface_loss(x, weight, label, s=30.0, m=0.35)
    # bf16 MXU inputs (f32 accumulation) -> slightly looser tolerance than pure f32.
    assert jnp.allclose(loss, ref, atol=5e-2, rtol=5e-2), (loss, ref)

    print("KERNEL_OK")
</pallas_src>

<mosaic_0001>
module attributes {stable_mosaic.version = 11 : i64} {
  func.func @cosface_loss_kernel(%arg0: i32, %arg1: i32, %arg2: memref<8x128xbf16, #tpu.memory_space<vmem>>, %arg3: memref<128x128xbf16, #tpu.memory_space<vmem>>, %arg4: memref<8x1xi32, #tpu.memory_space<vmem>>, %arg5: memref<8x1xf32, #tpu.memory_space<vmem>>, %arg6: memref<8x1xf32, #tpu.memory_space<vmem>>, %arg7: memref<8x1xf32, #tpu.memory_space<vmem>>, %arg8: memref<8x1xf32, #tpu.memory_space<vmem>>) attributes {dimension_semantics = [#tpu.dimension_semantics<parallel>, #tpu.dimension_semantics<arbitrary>], iteration_bounds = array<i64: 1, 1>, scalar_prefetch = 0 : i64, scratch_operands = 3 : i64, tpu.core_type = #tpu.core_type<tc>, window_params = [{transform_indices = @transform_0, window_bounds = array<i64: 8, 128>}, {transform_indices = @transform_1, window_bounds = array<i64: 128, 128>}, {transform_indices = @transform_2, window_bounds = array<i64: 8, 1>}, {transform_indices = @transform_3, window_bounds = array<i64: 8, 1>}]} {
    %c0_i32 = arith.constant 0 : i32
    %0 = arith.cmpi eq, %arg1, %c0_i32 : i32
    %1 = arith.extui %0 : i1 to i32
    %c0_i32_0 = arith.constant 0 : i32
    %2 = arith.cmpi ne, %1, %c0_i32_0 : i32
    scf.if %2 {
      %cst_28 = arith.constant -1.000000e+30 : f32
      %50 = vector.broadcast %cst_28 : f32 to vector<8x1xf32>
      %c0_29 = arith.constant 0 : index
      %c0_30 = arith.constant 0 : index
      %51 = vector.load %arg6[%c0_29, %c0_30] : memref<8x1xf32, #tpu.memory_space<vmem>>, vector<8x1xf32>
      tpu.vector_store %arg6[%c0_29, %c0_30], %50 {strides = array<i32>} : memref<8x1xf32, #tpu.memory_space<vmem>>, vector<8x1xf32>,
      %cst_31 = arith.constant 0.000000e+00 : f32
      %52 = vector.broadcast %cst_31 : f32 to vector<8x1xf32>
      %c0_32 = arith.constant 0 : index
      %c0_33 = arith.constant 0 : index
      %53 = vector.load %arg7[%c0_32, %c0_33] : memref<8x1xf32, #tpu.memory_space<vmem>>, vector<8x1xf32>
      tpu.vector_store %arg7[%c0_32, %c0_33], %52 {strides = array<i32>} : memref<8x1xf32, #tpu.memory_space<vmem>>, vector<8x1xf32>,
      %cst_34 = arith.constant 0.000000e+00 : f32
      %54 = vector.broadcast %cst_34 : f32 to vector<8x1xf32>
      %c0_35 = arith.constant 0 : index
      %c0_36 = arith.constant 0 : index
      %55 = vector.load %arg8[%c0_35, %c0_36] : memref<8x1xf32, #tpu.memory_space<vmem>>, vector<8x1xf32>
      tpu.vector_store %arg8[%c0_35, %c0_36], %54 {strides = array<i32>} : memref<8x1xf32, #tpu.memory_space<vmem>>, vector<8x1xf32>,
    } else {
    }
    %c0 = arith.constant 0 : index
    %c0_1 = arith.constant 0 : index
    %3 = vector.load %arg2[%c0, %c0_1] : memref<8x128xbf16, #tpu.memory_space<vmem>>, vector<8x128xbf16>
    %c0_2 = arith.constant 0 : index
    %c0_3 = arith.constant 0 : index
    %4 = vector.load %arg3[%c0_2, %c0_3] : memref<128x128xbf16, #tpu.memory_space<vmem>>, vector<128x128xbf16>
    %cst = arith.constant dense<0.000000e+00> : vector<8x128xf32>
    %5 = tpu.matmul %3, %4, %cst {dimension_numbers = #tpu.dot_dimension_numbers<[1], [0], [0], [1], [0, 0, 1, 1], [], []>} : vector<8x128xbf16>, vector<128x128xbf16>, vector<8x128xf32> -> vector<8x128xf32>
    %6 = tpu.iota {dimensions = array<i32: 1>} : vector<8x128xi32>
    %c0_4 = arith.constant 0 : index
    %c0_5 = arith.constant 0 : index
    %7 = vector.load %arg4[%c0_4, %c0_5] : memref<8x1xi32, #tpu.memory_space<vmem>>, vector<8x1xi32>
    %c128_i32 = arith.constant 128 : i32
    %8 = arith.muli %arg1, %c128_i32 : i32
    %9 = vector.broadcast %8 : i32 to vector<8x1xi32>
    %10 = arith.subi %7, %9 : vector<8x1xi32>
    %11 = vector.broadcast %10 : vector<8x1xi32> to vector<8x128xi32>
    %12 = arith.cmpi eq, %6, %11 : vector<8x128xi32>
    %cst_6 = arith.constant 3.500000e-01 : f32
    %13 = vector.broadcast %cst_6 : f32 to vector<8x128xf32>
    %14 = arith.subf %5, %13 : vector<8x128xf32>
    %15 = arith.select %12, %14, %5 : vector<8x128xi1>, vector<8x128xf32>
    %cst_7 = arith.constant 3.000000e+01 : f32
    %16 = vector.broadcast %cst_7 : f32 to vector<8x128xf32>
    %17 = arith.mulf %16, %15 : vector<8x128xf32>
    %c128_i32_8 = arith.constant 128 : i32
    %18 = arith.muli %arg1, %c128_i32_8 : i32
    %c16_i32 = arith.constant 16 : i32
    %19 = arith.subi %c16_i32, %18 : i32
    %20 = vector.broadcast %19 : i32 to vector<8x128xi32>
    %21 = arith.cmpi slt, %6, %20 : vector<8x128xi32>
    %cst_9 = arith.constant -1.000000e+30 : f32
    %22 = vector.broadcast %cst_9 : f32 to vector<8x128xf32>
    %23 = arith.select %21, %17, %22 : vector<8x128xi1>, vector<8x128xf32>
    %c0_10 = arith.constant 0 : index
    %c0_11 = arith.constant 0 : index
    %24 = vector.load %arg8[%c0_10, %c0_11] : memref<8x1xf32, #tpu.memory_space<vmem>>, vector<8x1xf32>
    %cst_12 = arith.constant 0.000000e+00 : f32
    %25 = vector.broadcast %cst_12 : f32 to vector<8x128xf32>
    %26 = arith.select %12, %23, %25 : vector<8x128xi1>, vector<8x128xf32>
    %cst_13 = arith.constant dense<0.000000e+00> : vector<8xf32>
    %27 = vector.multi_reduction <add>, %26, %cst_13 [1] : vector<8x128xf32> to vector<8xf32>
    %28 = vector.shape_cast %27 : vector<8xf32> to vector<8x1xf32>
    %29 = arith.addf %24, %28 : vector<8x1xf32>
    %c0_14 = arith.constant 0 : index
    %c0_15 = arith.constant 0 : index
    %30 = vector.load %arg8[%c0_14, %c0_15] : memref<8x1xf32, #tpu.memory_space<vmem>>, vector<8x1xf32>
    tpu.vector_store %arg8[%c0_14, %c0_15], %29 {strides = array<i32>} : memref<8x1xf32, #tpu.memory_space<vmem>>, vector<8x1xf32>,
    %c0_16 = arith.constant 0 : index
    %c0_17 = arith.constant 0 : index
    %31 = vector.load %arg6[%c0_16, %c0_17] : memref<8x1xf32, #tpu.memory_space<vmem>>, vector<8x1xf32>
    %cst_18 = arith.constant dense<0xFF800000> : vector<8xf32>
    %32 = vector.multi_reduction <maximumf>, %23, %cst_18 [1] : vector<8x128xf32> to vector<8xf32>
    %33 = vector.shape_cast %32 : vector<8xf32> to vector<8x1xf32>
    %34 = arith.maximumf %31, %33 : vector<8x1xf32>
    %c0_19 = arith.constant 0 : index
    %c0_20 = arith.constant 0 : index
    %35 = vector.load %arg7[%c0_19, %c0_20] : memref<8x1xf32, #tpu.memory_space<vmem>>, vector<8x1xf32>
    %36 = arith.subf %31, %34 : vector<8x1xf32>
    %37 = math.exp %36 : vector<8x1xf32>
    %38 = arith.mulf %35, %37 : vector<8x1xf32>
    %39 = vector.broadcast %34 : vector<8x1xf32> to vector<8x128xf32>
    %40 = arith.subf %23, %39 : vector<8x128xf32>
    %41 = math.exp %40 : vector<8x128xf32>
    %cst_21 = arith.constant dense<0.000000e+00> : vector<8xf32>
    %42 = vector.multi_reduction <add>, %41, %cst_21 [1] : vector<8x128xf32> to vector<8xf32>
    %43 = vector.shape_cast %42 : vector<8xf32> to vector<8x1xf32>
    %44 = arith.addf %38, %43 : vector<8x1xf32>
    %c0_22 = arith.constant 0 : index
    %c0_23 = arith.constant 0 : index
    %45 = vector.load %arg7[%c0_22, %c0_23] : memref<8x1xf32, #tpu.memory_space<vmem>>, vector<8x1xf32>
    tpu.vector_store %arg7[%c0_22, %c0_23], %44 {strides = array<i32>} : memref<8x1xf32, #tpu.memory_space<vmem>>, vector<8x1xf32>,
    %c0_24 = arith.constant 0 : index
    %c0_25 = arith.constant 0 : index
    %46 = vector.load %arg6[%c0_24, %c0_25] : memref<8x1xf32, #tpu.memory_space<vmem>>, vector<8x1xf32>
    tpu.vector_store %arg6[%c0_24, %c0_25], %34 {strides = array<i32>} : memref<8x1xf32, #tpu.memory_space<vmem>>, vector<8x1xf32>,
    %c0_i32_26 = arith.constant 0 : i32
    %47 = arith.cmpi eq, %arg1, %c0_i32_26 : i32
    %48 = arith.extui %47 : i1 to i32
    %c0_i32_27 = arith.constant 0 : i32
    %49 = arith.cmpi ne, %48, %c0_i32_27 : i32
    scf.if %49 {
      %c0_28 = arith.constant 0 : index
      %c0_29 = arith.constant 0 : index
      %50 = vector.load %arg6[%c0_28, %c0_29] : memref<8x1xf32, #tpu.memory_space<vmem>>, vector<8x1xf32>
      %c0_30 = arith.constant 0 : index
      %c0_31 = arith.constant 0 : index
      %51 = vector.load %arg7[%c0_30, %c0_31] : memref<8x1xf32, #tpu.memory_space<vmem>>, vector<8x1xf32>
      %52 = math.log %51 : vector<8x1xf32>
      %53 = arith.addf %50, %52 : vector<8x1xf32>
      %c0_32 = arith.constant 0 : index
      %c0_33 = arith.constant 0 : index
      %54 = vector.load %arg8[%c0_32, %c0_33] : memref<8x1xf32, #tpu.memory_space<vmem>>, vector<8x1xf32>
      %55 = arith.subf %53, %54 : vector<8x1xf32>
      %c0_34 = arith.constant 0 : index
      %c0_35 = arith.constant 0 : index
      %56 = vector.load %arg5[%c0_34, %c0_35] : memref<8x1xf32, #tpu.memory_space<vmem>>, vector<8x1xf32>
      tpu.vector_store %arg5[%c0_34, %c0_35], %55 {strides = array<i32>} : memref<8x1xf32, #tpu.memory_space<vmem>>, vector<8x1xf32>,
    } else {
    }
    return
  }
  func.func @transform_0(%arg0: i32, %arg1: i32) -> (i32, i32) {
    %c0_i32 = arith.constant 0 : i32
    %c0_i32_0 = arith.constant 0 : i32
    return %arg0, %c0_i32 : i32, i32
  }
  func.func @transform_1(%arg0: i32, %arg1: i32) -> (i32, i32) {
    %c0_i32 = arith.constant 0 : i32
    %c0_i32_0 = arith.constant 0 : i32
    return %c0_i32, %arg1 : i32, i32
  }
  func.func @transform_2(%arg0: i32, %arg1: i32) -> (i32, i32) {
    %c0_i32 = arith.constant 0 : i32
    %c0_i32_0 = arith.constant 0 : i32
    return %arg0, %c0_i32 : i32, i32
  }
  func.func @transform_3(%arg0: i32, %arg1: i32) -> (i32, i32) {
    %c0_i32 = arith.constant 0 : i32
    %c0_i32_0 = arith.constant 0 : i32
    return %arg0, %c0_i32 : i32, i32
  }
}

</mosaic_0001>

<llo_original>
// kernel: tpu_custom_call.1
$region0: #{tpu_custom_call.1}
  #allocation0 [shape = 'u32[]', space=smem, size = 0x4, offset = 0x4, fixed_abs, tag = 'smem constant byte address 0x4 - core index']
  #allocation1 [shape = 'u32[144,128]{1,0:T(1,128)}', space=vmem, size = 0x12000, scoped, tag = 'internal scratch']
  #allocation2 [shape = 'f32[8,1]{1,0:T(8,128)}', space=vmem, size = 0x1000, scoped, tag = 'scratch operand']
  #allocation3 [shape = 'f32[8,1]{1,0:T(8,128)}', space=vmem, size = 0x1000, scoped, tag = 'scratch operand']
  #allocation4 [shape = 'f32[8,1]{1,0:T(8,128)}', space=vmem, size = 0x1000, scoped, tag = 'scratch operand']
  %s0 = inlined_call_operand.vmem [shape: bf16[8,128], index: 0, kind: input, shape index: {}]
  %s1 = inlined_call_operand.hbm [shape: bf16[128,128], index: 1, kind: input, shape index: {}]
  %s2 = inlined_call_operand.vmem [shape: s32[8,1], index: 2, kind: input, shape index: {}]
  %s3 = inlined_call_operand.vmem [shape: f32[8,1], index: 3, kind: output, shape index: {}]
  %s4 = sld [smem:[#allocation0]]
  $region34: #{tpu_custom_call.1} parent=0
    _
  %s6 = ssub.s32 1, %s4
  %s7 = scalar_select 0, %s6, %s4
  $region1: #{tpu_custom_call.1} parent=0
    #allocation5 [shape = 'u8[32768]{0}', space=vmem, size = 0x8000, scoped, tag = 'input window, operand 1, single buffered']
    #allocation6 [shape = 's32[1]{0}', space=sflag, size = 0x4, scoped, tag = 'scoped memory for tpu_custom_call.1']
    %8 = vsyncpa [#allocation6], 0
    // Predicated region
    $region2: #{tpu_custom_call.1} parent=1 // pred_check
      _
    $region3: #{tpu_custom_call.1} parent=1 // pred_check_branch
      %10 = sbr.rel (0) target = $region5
    $region4: #{tpu_custom_call.1} parent=1 // pred_region
      _
    $region5: #{tpu_custom_call.1} parent=1 // pred_fallthru
      _
    // Predicated region
    $region6: #{tpu_custom_call.1} parent=1 // pred_check
      _
    $region7: #{tpu_custom_call.1} parent=1 // pred_check_branch
      %12 = sbr.rel (0) target = $region9
    $region8: #{tpu_custom_call.1} parent=1 // pred_region
      %s14 = ssub.s32 1024, 1024
      %15 = vsyncadd [#allocation6], %s14
      %s16 = sshll.u32 [#allocation5], 4
      %s17 = int_to_ptr.vmem [resolvable:$true] %s16
      %22 = dma.hbm_to_vmem [thread:$0]  %s1, 1024, %s17, [#allocation6], 64, 64, 4
    $region9: #{tpu_custom_call.1} parent=1 // pred_fallthru
      _
    // Predicated region
    $region10: #{tpu_custom_call.1} parent=1 // pred_check
      _
    $region11: #{tpu_custom_call.1} parent=1 // pred_check_branch
      %24 = sbr.rel (0) target = $region13
    $region12: #{tpu_custom_call.1} parent=1 // pred_region
      _
    $region13: #{tpu_custom_call.1} parent=1 // pred_fallthru
      _
    // Predicated region
    $region14: #{tpu_custom_call.1} parent=1 // pred_check
      _
    $region15: #{tpu_custom_call.1} parent=1 // pred_check_branch
      %26 = sbr.rel (0) target = $region17
    $region16: #{tpu_custom_call.1} parent=1 // pred_region
      %27 = dma.done [#allocation6], 1024
    $region17: #{tpu_custom_call.1} parent=1 // pred_fallthru
      _
    %p29 = scmp.eq.s32.totalorder 0, 0
    // Predicated region
    $region18: #{tpu_custom_call.1} parent=1 // pred_check
      %p30 = pneg %p29
    $region19: #{tpu_custom_call.1} parent=1 // pred_check_branch
      %32 = sbr.rel (%p30) target = $region21
    $region20: #{tpu_custom_call.1} parent=1 // pred_region
      %vm33 = vcmask 7168
      %34 = vst.msk [vmem:[#allocation2] sm:$0xff] %vm33, -1e+30
      %35 = vst.msk [vmem:[#allocation3] sm:$0xff] %vm33, 0.0
      %36 = vst.msk [vmem:[#allocation4] sm:$0xff] %vm33, 0.0
    $region21: #{tpu_custom_call.1} parent=1 // pred_fallthru
      _
    %v37 = vld [vmem:[%s0] sm:$0xf]
    %v38 = vld [vmem:[#allocation5] sm:$0xf]
    %v39 = vld [vmem:[#allocation5 + $0x4] sm:$0xf]
    %v40 = vld [vmem:[#allocation5 + $0x8] sm:$0xf]
    %v41 = vld [vmem:[#allocation5 + $0xc] sm:$0xf]
    %v42 = vld [vmem:[#allocation5 + $0x10] sm:$0xf]
    %v43 = vld [vmem:[#allocation5 + $0x14] sm:$0xf]
    %v44 = vld [vmem:[#allocation5 + $0x18] sm:$0xf]
    %v45 = vld [vmem:[#allocation5 + $0x1c] sm:$0xf]
    %v46 = vld [vmem:[#allocation5 + $0x20] sm:$0xf]
    %v47 = vld [vmem:[#allocation5 + $0x24] sm:$0xf]
    %v48 = vld [vmem:[#allocation5 + $0x28] sm:$0xf]
    %v49 = vld [vmem:[#allocation5 + $0x2c] sm:$0xf]
    %v50 = vld [vmem:[#allocation5 + $0x30] sm:$0xf]
    %v51 = vld [vmem:[#allocation5 + $0x34] sm:$0xf]
    %v52 = vld [vmem:[#allocation5 + $0x38] sm:$0xf]
    %v53 = vld [vmem:[#allocation5 + $0x3c] sm:$0xf]
    %v70 = vunpack.c.l.b16 %v38
    %v71 = vunpack.c.l.b16 %v39
    %v72 = vunpack.c.l.b16 %v40
    %v73 = vunpack.c.l.b16 %v41
    %v74 = vunpack.c.l.b16 %v42
    %v75 = vunpack.c.l.b16 %v43
    %v76 = vunpack.c.l.b16 %v44
    %v77 = vunpack.c.l.b16 %v45
    %v78 = vunpack.c.l.b16 %v46
    %v79 = vunpack.c.l.b16 %v47
    %v80 = vunpack.c.l.b16 %v48
    %v81 = vunpack.c.l.b16 %v49
    %v82 = vunpack.c.l.b16 %v50
    %v83 = vunpack.c.l.b16 %v51
    %v84 = vunpack.c.l.b16 %v52
    %v85 = vunpack.c.l.b16 %v53
    %v86 = vpack.c.b16 %v71, %v70
    %v87 = vpack.c.b16 %v73, %v72
    %v88 = vpack.c.b16 %v75, %v74
    %v89 = vpack.c.b16 %v77, %v76
    %v90 = vpack.c.b16 %v79, %v78
    %v91 = vpack.c.b16 %v81, %v80
    %v92 = vpack.c.b16 %v83, %v82
    %v93 = vpack.c.b16 %v85, %v84
    %102 = vmatprep.subr.bf16.mxu0 0
    %103 = vmatpush1.bf16.msra.mxu0 %v86
    %104 = vmatprep.subr.bf16.mxu0 0
    %105 = vmatpush1.bf16.msra.mxu0 %v87
    %106 = vmatprep.subr.bf16.mxu0 0
    %107 = vmatpush1.bf16.msra.mxu0 %v88
    %108 = vmatprep.subr.bf16.mxu0 0
    %109 = vmatpush1.bf16.msra.mxu0 %v89
    %110 = vmatprep.subr.bf16.mxu0 0
    %111 = vmatpush1.bf16.msra.mxu0 %v90
    %112 = vmatprep.subr.bf16.mxu0 0
    %113 = vmatpush1.bf16.msra.mxu0 %v91
    %114 = vmatprep.subr.bf16.mxu0 0
    %115 = vmatpush1.bf16.msra.mxu0 %v92
    %116 = vmatprep.subr.bf16.mxu0 0
    %117 = vmatpush1.bf16.msra.mxu0 %v93
    %118 = vmatprep.subr.bf16.mxu0 0
    %119 = vmatpush1.bf16.msra.mxu0 0
    %120 = vmatprep.subr.bf16.mxu0 0
    %121 = vmatpush1.bf16.msra.mxu0 0
    %122 = vmatprep.subr.bf16.mxu0 0
    %123 = vmatpush1.bf16.msra.mxu0 0
    %124 = vmatprep.subr.bf16.mxu0 0
    %125 = vmatpush1.bf16.msra.mxu0 0
    %126 = vmatprep.subr.bf16.mxu0 0
    %127 = vmatpush1.bf16.msra.mxu0 0
    %128 = vmatprep.subr.bf16.mxu0 0
    %129 = vmatpush1.bf16.msra.mxu0 0
    %130 = vmatprep.subr.bf16.mxu0 0
    %131 = vmatpush1.bf16.msra.mxu0 0
    %132 = vmatprep.subr.bf16.mxu0 0
    %133 = vmatpush1.bf16.msra.mxu0 0
    %134 = vmatprep.mubr.bf16.mxu0 0
    %135 = vmatmul.mubr.bf16.gmra.mrb[0].mxu0 %v37
    %v136 = vpop.f32.mrb[0].mxu0
    %v137 = vadd.f32 0.0, %v136
    %v138 = vpop.f32.mrb[0].mxu0
    %v139 = vpop.f32.mrb[0].mxu0
    %v140 = vpop.f32.mrb[0].mxu0
    %141 = vdwg.mxu0
    %v142 = vlaneseq
    %v143 = vand.u32 %v142, 127
    %v144 = vld [vmem:[%s2] sm:$0xff]
    %s145 = smul.u32 0, 128
    %v146 = vstv %s145
    %v147 = vsub.s32 %v144, %v146
    %148 = vset.pattern.permute.xlu0 0
    %149 = vperm.xlu0 %148, %v147
    %v150 = vpop.permute.xlu0 %149
    %vm151 = vcmp.eq.s32.totalorder %v143, %v150
    %v152 = vsub.f32 %v137, 0.35
    %v153 = vsel %vm151, %v152, %v137
    %v154 = vmul.f32 %v153, 30.0
    %s155 = ssub.s32 16, %s145
    %v156 = vstv %s155
    %vm157 = vcmp.lt.s32.totalorder %v143, %v156
    %v158 = vsel %vm157, %v154, -1e+30
    %v159 = vld [vmem:[#allocation4] sm:$0xff]
    %v160 = vsel %vm151, %v158, 0.0
    %161 = vadd.xlane.f32.xlu0 %v160
    %v162 = vpop.xlane.xlu0 %161
    %v163 = vadd.f32 %v159, %v162
    %vm164 = vcmask 7168
    %165 = vst.msk [vmem:[#allocation4] sm:$0xff] %vm164, %v163
    %v166 = vld [vmem:[#allocation2] sm:$0xff]
    %167 = vmax.xlane.f32.xlu0 %v158
    %v168 = vpop.xlane.xlu0 %167
    %v169 = vmax.f32 %v166, %v168
    %v170 = vld [vmem:[#allocation3] sm:$0xff]
    %v171 = vsub.f32 %v166, %v169
    %v172 = vmul.f32 %v171, 1.442695
    %v173 = vpow.pop %v172
    %v174 = vmul.f32 %v170, %v173
    %176 = vset.pattern.permute.xlu0 0
    %177 = vperm.xlu0 %176, %v169
    %v178 = vpop.permute.xlu0 %177
    %v180 = vsub.f32 %v158, %v178
    %v181 = vmul.f32 %v180, 1.442695
    %v182 = vpow.pop %v181
    %183 = vadd.xlane.f32.xlu0 %v182
    %v184 = vpop.xlane.xlu0 %183
    %v185 = vadd.f32 %v174, %v184
    %186 = vst.msk [vmem:[#allocation3] sm:$0xff] %vm164, %v185
    %187 = vst.msk [vmem:[#allocation2] sm:$0xff] %vm164, %v169
    // Predicated region
    $region22: #{tpu_custom_call.1} parent=1 // pred_check
      %p188 = pneg %p29
    $region23: #{tpu_custom_call.1} parent=1 // pred_check_branch
      %190 = sbr.rel (%p188) target = $region25
    $region24: #{tpu_custom_call.1} parent=1 // pred_region
      %v191 = vld [vmem:[#allocation2] sm:$0xff]
      %v192 = vld [vmem:[#allocation3] sm:$0xff]
      %v193 = vlog2.pop %v192
      %v194 = vmul.f32 %v193, 0.6931472
      %v195 = vadd.f32 %v191, %v194
      %v196 = vld [vmem:[#allocation4] sm:$0xff]
      %v197 = vsub.f32 %v195, %v196
      %198 = vst.msk [vmem:[%s3] sm:$0xff] %vm164, %v197
    $region25: #{tpu_custom_call.1} parent=1 // pred_fallthru
      _
    // Predicated region
    $region26: #{tpu_custom_call.1} parent=1 // pred_check
      _
    $region27: #{tpu_custom_call.1} parent=1 // pred_check_branch
      %200 = sbr.rel (0) target = $region29
    $region28: #{tpu_custom_call.1} parent=1 // pred_region
      _
    $region29: #{tpu_custom_call.1} parent=1 // pred_fallthru
      _
    // Predicated region
    $region30: #{tpu_custom_call.1} parent=1 // pred_check
      _
    $region31: #{tpu_custom_call.1} parent=1 // pred_check_branch
      %202 = sbr.rel (0) target = $region33
    $region32: #{tpu_custom_call.1} parent=1 // pred_region
      _
    $region33: #{tpu_custom_call.1} parent=1 // pred_fallthru
      _
    %203 = vsyncpa [#allocation6], 1

</llo_original>
